<compile_context>
chip_gen: v7x
topology: tpu7x:2x2x1
jax: 0.10.0
libtpu: 0.0.40
codegen_flags: <defaults>
</compile_context>

<pallas_src>
import jax
import jax.numpy as jnp
from jax.experimental import pallas as pl
from jax.experimental.pallas import tpu as pltpu

# Finite "-inf": exp() underflows to exactly 0.0, and avoids inf-inf NaNs.
_NEG_INF = -1e30


def _round_up(x, m):
    return (x + m - 1) // m * m


# ---------------------------------------------------------------------------
# Stage 1: per-sub-bag DimReduction + gated-attention pooling (online softmax).
# grid = (num_sub [parallel], n_tiles [arbitrary])
# ---------------------------------------------------------------------------
def _make_stage1_kernel(n, D, tile_n, n_tiles):
    def kernel(x_ref, wdr_ref, wvu_ref, bvu_ref, ww_ref, bw_ref,
               pooled_ref, m_sc, l_sc, acc_sc):
        k = pl.program_id(1)

        @pl.when(k == 0)
        def _():
            m_sc[...] = jnp.full_like(m_sc, _NEG_INF)
            l_sc[...] = jnp.zeros_like(l_sc)
            acc_sc[...] = jnp.zeros_like(acc_sc)

        # Valid-row mask for the (possibly padded) last n-tile.
        row = k * tile_n + jax.lax.broadcasted_iota(jnp.int32, (tile_n, 1), 0)
        valid = row < n                                             # (tile_n, 1)

        # DimReduction: Linear(no bias) + ReLU (bf16 operands, f32 accum).
        xi = x_ref[0].astype(jnp.bfloat16)                          # (tile_n, 2L)
        mid = jnp.dot(xi, wdr_ref[...], preferred_element_type=jnp.float32)
        mid = jnp.maximum(mid, 0.0)
        mid = jnp.where(valid, mid, 0.0)                            # kill padded rows

        # Gated attention: one fused (tile_n, 2D) matmul, split into V/U halves.
        vu = jnp.dot(mid.astype(jnp.bfloat16), wvu_ref[...],
                     preferred_element_type=jnp.float32) + bvu_ref[...]
        gated = jnp.tanh(vu[:, :D]) * jax.nn.sigmoid(vu[:, D:])     # (tile_n, D)

        # Linear(D->1) score: VPU multiply + cross-lane reduce (keep off MXU).
        # bw cancels in the softmax but is kept for faithfulness.
        scores = (jnp.sum(gated * ww_ref[...], axis=-1, keepdims=True)
                  + bw_ref[0, 0])                                   # (tile_n, 1)
        scores = jnp.where(valid, scores, _NEG_INF)

        # Online-softmax accumulation (unnormalized pooled feature).
        m_new = jnp.maximum(m_sc[...], jnp.max(scores, axis=0, keepdims=True))
        alpha = jnp.exp(m_sc[...] - m_new)                          # (1, 1)
        p = jnp.exp(scores - m_new)                                 # (tile_n, 1)
        l_sc[...] = alpha * l_sc[...] + jnp.sum(p, axis=0, keepdims=True)
        acc_sc[...] = alpha * acc_sc[...] + jnp.sum(p * mid, axis=0, keepdims=True)
        m_sc[...] = m_new

        @pl.when(k == n_tiles - 1)
        def _():
            # Exact divide: runs once per sub-bag, cost is negligible.
            pooled_ref[0] = acc_sc[...] / l_sc[...]                 # (1, L)

    return kernel


# ---------------------------------------------------------------------------
# Stage 2: attention over pooled sub-bag features + classifier (tiny).
# ---------------------------------------------------------------------------
def _make_stage2_kernel(D):
    def kernel(feats_ref, wvu_ref, bvu_ref, ww_ref, wc_ref, bc_ref, bw_ref,
               pred_ref, afeats_ref, aa_ref):
        feats = feats_ref[...]                                      # (num_sub, L) f32
        vu = jnp.dot(feats.astype(jnp.bfloat16), wvu_ref[...],
                     preferred_element_type=jnp.float32) + bvu_ref[...]
        g = jnp.tanh(vu[:, :D]) * jax.nn.sigmoid(vu[:, D:])         # (num_sub, D)
        s = (jnp.sum(g * ww_ref[...], axis=-1, keepdims=True)
             + bw_ref[0, 0])                                        # (num_sub, 1)
        m = jnp.max(s, axis=0, keepdims=True)
        e = jnp.exp(s - m)
        aa = e / jnp.sum(e, axis=0, keepdims=True)                  # exact softmax

        afeats = feats * aa                                         # (num_sub, L)
        afeat = jnp.sum(afeats, axis=0, keepdims=True)              # (1, L)
        pred_ref[...] = (jnp.dot(afeat.astype(jnp.bfloat16), wc_ref[...],
                                 preferred_element_type=jnp.float32)
                         + bc_ref[...])                             # (1, cls_pad)
        afeats_ref[...] = afeats
        aa_ref[...] = aa

    return kernel


# ---------------------------------------------------------------------------
# Wrapper
# ---------------------------------------------------------------------------
def first_stream_classifier(x, params, tile_n=512):
    """x: (num_sub, n_patches, 2L) f32.  Returns (pred, afeats, AA)."""
    num_sub, n, in_dim = x.shape
    L = params["wdr"].shape[1]
    D = params["wv"].shape[1]
    num_cls = params["wc"].shape[1]
    cls_pad = _round_up(num_cls, 128)          # lane-dense classifier output

    # n-tile: multiple of 16 (bf16 sublane pack), never bigger than needed.
    tile_n = min(tile_n, _round_up(n, 16))
    n_tiles = pl.cdiv(n, tile_n)

    # ---- host-side weight prepacking (one-time, tiny) ----------------------
    wdr = params["wdr"].astype(jnp.bfloat16)                             # (2L, L)
    wvu = jnp.concatenate([params["wv"], params["wu"]], axis=1).astype(jnp.bfloat16)
    bvu = jnp.concatenate([params["bv"], params["bu"]], axis=1).astype(jnp.float32)
    ww = params["ww"].astype(jnp.float32)                                # (1, D)
    bw = params["bw"].astype(jnp.float32).reshape(1, 1)                  # scalar (SMEM)
    wc = jnp.zeros((L, cls_pad), jnp.bfloat16).at[:, :num_cls].set(
        params["wc"].astype(jnp.bfloat16))
    bc = jnp.zeros((1, cls_pad), jnp.float32).at[:, :num_cls].set(
        params["bc"].astype(jnp.float32))

    # ---- stage 1 ------------------------------------------------------------
    stage1 = _make_stage1_kernel(n, D, tile_n, n_tiles)
    sub_feats3 = pl.pallas_call(
        stage1,
        out_shape=jax.ShapeDtypeStruct((num_sub, 1, L), jnp.float32),
        grid_spec=pltpu.PrefetchScalarGridSpec(
            num_scalar_prefetch=0,
            grid=(num_sub, n_tiles),
            in_specs=[
                pl.BlockSpec((1, tile_n, in_dim), lambda i, k: (i, k, 0)),  # x (f32, streamed)
                pl.BlockSpec((in_dim, L), lambda i, k: (0, 0)),             # wdr (resident)
                pl.BlockSpec((L, 2 * D), lambda i, k: (0, 0)),              # wv||wu
                pl.BlockSpec((1, 2 * D), lambda i, k: (0, 0)),              # bv||bu
                pl.BlockSpec((1, D), lambda i, k: (0, 0)),                  # ww
                pl.BlockSpec(memory_space=pltpu.MemorySpace.SMEM),          # bw scalar
            ],
            out_specs=pl.BlockSpec((1, 1, L), lambda i, k: (i, 0, 0)),
            # online-softmax carries: running max, running denom, pooled partial
            scratch_shapes=[pltpu.VMEM((1, 1), jnp.float32),
                            pltpu.VMEM((1, 1), jnp.float32),
                            pltpu.VMEM((1, L), jnp.float32)],
        ),
        compiler_params=pltpu.CompilerParams(
            # sub-bag axis parallel (v7x megacore); n-tile axis is the reduction
            dimension_semantics=("parallel", "arbitrary"),
            vmem_limit_bytes=64 * 1024 * 1024,
        ),
    )(x, wdr, wvu, bvu, ww, bw)
    sub_feats = sub_feats3.reshape(num_sub, L)

    # ---- stage 2 (tiny) -----------------------------------------------------
    stage2 = _make_stage2_kernel(D)
    pred_pad, afeats, aa_col = pl.pallas_call(
        stage2,
        out_shape=(
            jax.ShapeDtypeStruct((1, cls_pad), jnp.float32),
            jax.ShapeDtypeStruct((num_sub, L), jnp.float32),
            jax.ShapeDtypeStruct((num_sub, 1), jnp.float32),
        ),
        grid_spec=pltpu.PrefetchScalarGridSpec(
            num_scalar_prefetch=0,
            grid=(1,),
            in_specs=[
                pl.BlockSpec((num_sub, L), lambda i: (0, 0)),
                pl.BlockSpec((L, 2 * D), lambda i: (0, 0)),
                pl.BlockSpec((1, 2 * D), lambda i: (0, 0)),
                pl.BlockSpec((1, D), lambda i: (0, 0)),
                pl.BlockSpec((L, cls_pad), lambda i: (0, 0)),
                pl.BlockSpec((1, cls_pad), lambda i: (0, 0)),
                pl.BlockSpec(memory_space=pltpu.MemorySpace.SMEM),
            ],
            out_specs=[
                pl.BlockSpec((1, cls_pad), lambda i: (0, 0)),
                pl.BlockSpec((num_sub, L), lambda i: (0, 0)),
                pl.BlockSpec((num_sub, 1), lambda i: (0, 0)),
            ],
        ),
        compiler_params=pltpu.CompilerParams(
            dimension_semantics=("arbitrary",)),
    )(sub_feats, wvu, bvu, ww, wc, bc, bw)

    pred = pred_pad[:, :num_cls]
    AA = aa_col[:, 0]
    return pred, afeats, AA


# ---------------------------------------------------------------------------
# Parameter init (PyTorch Linear weights stored pre-transposed as (in, out)).
# ---------------------------------------------------------------------------
def init_params(key, L, D, num_cls):
    in_dim = 2 * L
    ks = jax.random.split(key, 8)
    scale = 0.05
    return {
        "wdr": scale * jax.random.normal(ks[0], (in_dim, L), jnp.float32),
        "wv": scale * jax.random.normal(ks[1], (L, D), jnp.float32),
        "bv": scale * jax.random.normal(ks[2], (1, D), jnp.float32),
        "wu": scale * jax.random.normal(ks[3], (L, D), jnp.float32),
        "bu": scale * jax.random.normal(ks[4], (1, D), jnp.float32),
        "ww": scale * jax.random.normal(ks[5], (1, D), jnp.float32),  # Linear(D->1) row
        "bw": jnp.zeros((1, 1), jnp.float32),
        "wc": scale * jax.random.normal(ks[6], (L, num_cls), jnp.float32),
        "bc": scale * jax.random.normal(ks[7], (1, num_cls), jnp.float32),
    }


# ---------------------------------------------------------------------------
# Pure-JAX f32 reference for a sanity check.
# ---------------------------------------------------------------------------
def _reference(x, p):
    def attn(feats):
        av = jnp.tanh(feats @ p["wv"] + p["bv"])
        au = jax.nn.sigmoid(feats @ p["wu"] + p["bu"])
        s = jnp.sum(av * au * p["ww"], axis=-1) + p["bw"][0, 0]
        return jax.nn.softmax(s)

    subs = []
    for i in range(x.shape[0]):
        mid = jnp.maximum(x[i] @ p["wdr"], 0.0)
        a = attn(mid)
        subs.append(jnp.sum(mid * a[:, None], axis=0))
    sub_feats = jnp.stack(subs, axis=0)
    AA = attn(sub_feats)
    afeats = sub_feats * AA[:, None]
    afeat = jnp.sum(afeats, axis=0, keepdims=True)
    pred = afeat @ p["wc"] + p["bc"]
    return pred, afeats, AA


if __name__ == "__main__":
    L, D, num_cls = 128, 128, 8          # small, TPU-friendly versions of (512,128,5)
    num_sub, n_patches = 4, 40           # 40 patches: exercises ragged last n-tile
    in_dim = 2 * L

    key = jax.random.PRNGKey(0)
    kx, kp = jax.random.split(key)
    x = jax.random.normal(kx, (num_sub, n_patches, in_dim), jnp.float32)
    params = init_params(kp, L, D, num_cls)

    # tile_n=16 -> 3 n-tiles per sub-bag (last one half-padded) to exercise the
    # online-softmax accumulation and padded-row masking at demo scale.
    pred, afeats, AA = first_stream_classifier(x, params, tile_n=16)
    jax.block_until_ready((pred, afeats, AA))

    assert pred.shape == (1, num_cls)
    assert afeats.shape == (num_sub, L)
    assert AA.shape == (num_sub,)

    # sanity check against pure-f32 reference (loose tol for bf16 MXU path)
    pred_r, afeats_r, AA_r = _reference(x, params)
    assert jnp.allclose(pred, pred_r, atol=3e-2, rtol=3e-2), \
        float(jnp.max(jnp.abs(pred - pred_r)))
    assert jnp.allclose(afeats, afeats_r, atol=3e-2, rtol=3e-2), \
        float(jnp.max(jnp.abs(afeats - afeats_r)))
    assert jnp.allclose(AA, AA_r, atol=1e-2, rtol=3e-2), \
        float(jnp.max(jnp.abs(AA - AA_r)))

    print("KERNEL_OK")
</pallas_src>

<mosaic_0001>
module attributes {stable_mosaic.version = 11 : i64} {
  func.func @kernel(%arg0: i32, %arg1: i32, %arg2: memref<1x16x256xf32, #tpu.memory_space<vmem>>, %arg3: memref<256x128xbf16, #tpu.memory_space<vmem>>, %arg4: memref<128x256xbf16, #tpu.memory_space<vmem>>, %arg5: memref<1x256xf32, #tpu.memory_space<vmem>>, %arg6: memref<1x128xf32, #tpu.memory_space<vmem>>, %arg7: memref<1x1xf32, #tpu.memory_space<smem>>, %arg8: memref<1x1x128xf32, #tpu.memory_space<vmem>>, %arg9: memref<1x1xf32, #tpu.memory_space<vmem>>, %arg10: memref<1x1xf32, #tpu.memory_space<vmem>>, %arg11: memref<1x128xf32, #tpu.memory_space<vmem>>) attributes {dimension_semantics = [#tpu.dimension_semantics<parallel>, #tpu.dimension_semantics<arbitrary>], iteration_bounds = array<i64: 4, 3>, scalar_prefetch = 0 : i64, scratch_operands = 3 : i64, tpu.core_type = #tpu.core_type<tc>, window_params = [{transform_indices = @transform_0, window_bounds = array<i64: 1, 16, 256>}, {pipeline_mode = #tpu.pipeline_mode<synchronous>, transform_indices = @transform_1, window_bounds = array<i64: 256, 128>}, {pipeline_mode = #tpu.pipeline_mode<synchronous>, transform_indices = @transform_2, window_bounds = array<i64: 128, 256>}, {pipeline_mode = #tpu.pipeline_mode<synchronous>, transform_indices = @transform_3, window_bounds = array<i64: 1, 256>}, {pipeline_mode = #tpu.pipeline_mode<synchronous>, transform_indices = @transform_4, window_bounds = array<i64: 1, 128>}, {transform_indices = @transform_5, window_bounds = array<i64: 1, 1>}, {transform_indices = @transform_6, window_bounds = array<i64: 1, 1, 128>}]} {
    %c0_i32 = arith.constant 0 : i32
    %0 = arith.cmpi eq, %arg1, %c0_i32 : i32
    %1 = arith.extui %0 : i1 to i32
    %c0_i32_0 = arith.constant 0 : i32
    %2 = arith.cmpi ne, %1, %c0_i32_0 : i32
    scf.if %2 {
      %cst_37 = arith.constant -1.000000e+30 : f32
      %74 = vector.broadcast %cst_37 : f32 to vector<1x1xf32>
      %c0_38 = arith.constant 0 : index
      %c0_39 = arith.constant 0 : index
      %75 = vector.load %arg9[%c0_38, %c0_39] : memref<1x1xf32, #tpu.memory_space<vmem>>, vector<1x1xf32>
      tpu.vector_store %arg9[%c0_38, %c0_39], %74 {strides = array<i32>} : memref<1x1xf32, #tpu.memory_space<vmem>>, vector<1x1xf32>,
      %cst_40 = arith.constant 0.000000e+00 : f32
      %76 = vector.broadcast %cst_40 : f32 to vector<1x1xf32>
      %c0_41 = arith.constant 0 : index
      %c0_42 = arith.constant 0 : index
      %77 = vector.load %arg10[%c0_41, %c0_42] : memref<1x1xf32, #tpu.memory_space<vmem>>, vector<1x1xf32>
      tpu.vector_store %arg10[%c0_41, %c0_42], %76 {strides = array<i32>} : memref<1x1xf32, #tpu.memory_space<vmem>>, vector<1x1xf32>,
      %cst_43 = arith.constant 0.000000e+00 : f32
      %78 = vector.broadcast %cst_43 : f32 to vector<1x128xf32>
      %c0_44 = arith.constant 0 : index
      %c0_45 = arith.constant 0 : index
      %79 = vector.load %arg11[%c0_44, %c0_45] : memref<1x128xf32, #tpu.memory_space<vmem>>, vector<1x128xf32>
      tpu.vector_store %arg11[%c0_44, %c0_45], %78 {strides = array<i32>} : memref<1x128xf32, #tpu.memory_space<vmem>>, vector<1x128xf32>,
    } else {
    }
    %c16_i32 = arith.constant 16 : i32
    %3 = arith.muli %arg1, %c16_i32 : i32
    %4 = tpu.iota {dimensions = array<i32: 0>} : vector<16x1xi32>
    %5 = vector.broadcast %3 : i32 to vector<16x1xi32>
    %6 = arith.addi %5, %4 : vector<16x1xi32>
    %c40_i32 = arith.constant 40 : i32
    %7 = vector.broadcast %c40_i32 : i32 to vector<16x1xi32>
    %8 = arith.cmpi slt, %6, %7 : vector<16x1xi32>
    %c0 = arith.constant 0 : index
    %c0_1 = arith.constant 0 : index
    %c0_2 = arith.constant 0 : index
    %9 = vector.load %arg2[%c0, %c0_1, %c0_2] : memref<1x16x256xf32, #tpu.memory_space<vmem>>, vector<1x16x256xf32>
    %10 = vector.shape_cast %9 : vector<1x16x256xf32> to vector<16x256xf32>
    %11 = arith.truncf %10 : vector<16x256xf32> to vector<16x256xbf16>
    %c0_3 = arith.constant 0 : index
    %c0_4 = arith.constant 0 : index
    %12 = vector.load %arg3[%c0_3, %c0_4] : memref<256x128xbf16, #tpu.memory_space<vmem>>, vector<256x128xbf16>
    %cst = arith.constant dense<0.000000e+00> : vector<16x128xf32>
    %13 = tpu.matmul %11, %12, %cst {dimension_numbers = #tpu.dot_dimension_numbers<[1], [0], [0], [1], [0, 0, 1, 1], [], []>} : vector<16x256xbf16>, vector<256x128xbf16>, vector<16x128xf32> -> vector<16x128xf32>
    %cst_5 = arith.constant 0.000000e+00 : f32
    %14 = vector.broadcast %cst_5 : f32 to vector<16x128xf32>
    %15 = arith.maximumf %13, %14 : vector<16x128xf32>
    %cst_6 = arith.constant 0.000000e+00 : f32
    %16 = vector.shape_cast %8 : vector<16x1xi1> to vector<16x1xi1>
    %17 = vector.broadcast %16 : vector<16x1xi1> to vector<16x128xi1>
    %18 = vector.broadcast %cst_6 : f32 to vector<16x128xf32>
    %19 = arith.select %17, %15, %18 : vector<16x128xi1>, vector<16x128xf32>
    %20 = arith.truncf %19 : vector<16x128xf32> to vector<16x128xbf16>
    %c0_7 = arith.constant 0 : index
    %c0_8 = arith.constant 0 : index
    %21 = vector.load %arg4[%c0_7, %c0_8] : memref<128x256xbf16, #tpu.memory_space<vmem>>, vector<128x256xbf16>
    %cst_9 = arith.constant dense<0.000000e+00> : vector<16x256xf32>
    %22 = tpu.matmul %20, %21, %cst_9 {dimension_numbers = #tpu.dot_dimension_numbers<[1], [0], [0], [1], [0, 0, 1, 1], [], []>} : vector<16x128xbf16>, vector<128x256xbf16>, vector<16x256xf32> -> vector<16x256xf32>
    %c0_10 = arith.constant 0 : index
    %c0_11 = arith.constant 0 : index
    %23 = vector.load %arg5[%c0_10, %c0_11] : memref<1x256xf32, #tpu.memory_space<vmem>>, vector<1x256xf32>
    %24 = vector.broadcast %23 : vector<1x256xf32> to vector<16x256xf32>
    %25 = arith.addf %22, %24 : vector<16x256xf32>
    %26 = vector.extract_strided_slice %25 {offsets = [0, 0], sizes = [16, 128], strides = [1, 1]} : vector<16x256xf32> to vector<16x128xf32>
    %27 = math.tanh %26 : vector<16x128xf32>
    %28 = vector.extract_strided_slice %25 {offsets = [0, 128], sizes = [16, 128], strides = [1, 1]} : vector<16x256xf32> to vector<16x128xf32>
    %29 = arith.negf %28 : vector<16x128xf32>
    %30 = math.exp %29 : vector<16x128xf32>
    %cst_12 = arith.constant 1.000000e+00 : f32
    %31 = vector.broadcast %cst_12 : f32 to vector<16x128xf32>
    %32 = arith.addf %31, %30 : vector<16x128xf32>
    %33 = arith.divf %31, %32 : vector<16x128xf32>
    %34 = arith.mulf %27, %33 : vector<16x128xf32>
    %c0_13 = arith.constant 0 : index
    %c0_14 = arith.constant 0 : index
    %35 = vector.load %arg6[%c0_13, %c0_14] : memref<1x128xf32, #tpu.memory_space<vmem>>, vector<1x128xf32>
    %36 = vector.broadcast %35 : vector<1x128xf32> to vector<16x128xf32>
    %37 = arith.mulf %34, %36 : vector<16x128xf32>
    %cst_15 = arith.constant dense<0.000000e+00> : vector<16xf32>
    %38 = vector.multi_reduction <add>, %37, %cst_15 [1] : vector<16x128xf32> to vector<16xf32>
    %39 = vector.shape_cast %38 : vector<16xf32> to vector<16x1xf32>
    %c0_16 = arith.constant 0 : index
    %c0_17 = arith.constant 0 : index
    %40 = memref.load %arg7[%c0_16, %c0_17] : memref<1x1xf32, #tpu.memory_space<smem>>
    %41 = vector.broadcast %40 : f32 to vector<16x1xf32>
    %42 = arith.addf %39, %41 : vector<16x1xf32>
    %cst_18 = arith.constant -1.000000e+30 : f32
    %43 = vector.broadcast %cst_18 : f32 to vector<16x1xf32>
    %44 = arith.select %8, %42, %43 : vector<16x1xi1>, vector<16x1xf32>
    %c0_19 = arith.constant 0 : index
    %c0_20 = arith.constant 0 : index
    %45 = vector.load %arg9[%c0_19, %c0_20] : memref<1x1xf32, #tpu.memory_space<vmem>>, vector<1x1xf32>
    %cst_21 = arith.constant dense<0xFF800000> : vector<1xf32>
    %46 = vector.multi_reduction <maximumf>, %44, %cst_21 [0] : vector<16x1xf32> to vector<1xf32>
    %47 = vector.shape_cast %46 : vector<1xf32> to vector<1x1xf32>
    %48 = arith.maximumf %45, %47 : vector<1x1xf32>
    %c0_22 = arith.constant 0 : index
    %c0_23 = arith.constant 0 : index
    %49 = vector.load %arg9[%c0_22, %c0_23] : memref<1x1xf32, #tpu.memory_space<vmem>>, vector<1x1xf32>
    %50 = arith.subf %49, %48 : vector<1x1xf32>
    %51 = math.exp %50 : vector<1x1xf32>
    %52 = vector.broadcast %48 : vector<1x1xf32> to vector<16x1xf32>
    %53 = arith.subf %44, %52 : vector<16x1xf32>
    %54 = math.exp %53 : vector<16x1xf32>
    %c0_24 = arith.constant 0 : index
    %c0_25 = arith.constant 0 : index
    %55 = vector.load %arg10[%c0_24, %c0_25] : memref<1x1xf32, #tpu.memory_space<vmem>>, vector<1x1xf32>
    %56 = arith.mulf %51, %55 : vector<1x1xf32>
    %cst_26 = arith.constant dense<0.000000e+00> : vector<1xf32>
    %57 = vector.multi_reduction <add>, %54, %cst_26 [0] : vector<16x1xf32> to vector<1xf32>
    %58 = vector.shape_cast %57 : vector<1xf32> to vector<1x1xf32>
    %59 = arith.addf %56, %58 : vector<1x1xf32>
    %c0_27 = arith.constant 0 : index
    %c0_28 = arith.constant 0 : index
    %60 = vector.load %arg10[%c0_27, %c0_28] : memref<1x1xf32, #tpu.memory_space<vmem>>, vector<1x1xf32>
    tpu.vector_store %arg10[%c0_27, %c0_28], %59 {strides = array<i32>} : memref<1x1xf32, #tpu.memory_space<vmem>>, vector<1x1xf32>,
    %c0_29 = arith.constant 0 : index
    %c0_30 = arith.constant 0 : index
    %61 = vector.load %arg11[%c0_29, %c0_30] : memref<1x128xf32, #tpu.memory_space<vmem>>, vector<1x128xf32>
    %62 = vector.broadcast %51 : vector<1x1xf32> to vector<1x128xf32>
    %63 = arith.mulf %62, %61 : vector<1x128xf32>
    %64 = vector.broadcast %54 : vector<16x1xf32> to vector<16x128xf32>
    %65 = arith.mulf %64, %19 : vector<16x128xf32>
    %cst_31 = arith.constant dense<0.000000e+00> : vector<128xf32>
    %66 = vector.multi_reduction <add>, %65, %cst_31 [0] : vector<16x128xf32> to vector<128xf32>
    %67 = vector.shape_cast %66 : vector<128xf32> to vector<1x128xf32>
    %68 = arith.addf %63, %67 : vector<1x128xf32>
    %c0_32 = arith.constant 0 : index
    %c0_33 = arith.constant 0 : index
    %69 = vector.load %arg11[%c0_32, %c0_33] : memref<1x128xf32, #tpu.memory_space<vmem>>, vector<1x128xf32>
    tpu.vector_store %arg11[%c0_32, %c0_33], %68 {strides = array<i32>} : memref<1x128xf32, #tpu.memory_space<vmem>>, vector<1x128xf32>,
    %c0_34 = arith.constant 0 : index
    %c0_35 = arith.constant 0 : index
    %70 = vector.load %arg9[%c0_34, %c0_35] : memref<1x1xf32, #tpu.memory_space<vmem>>, vector<1x1xf32>
    tpu.vector_store %arg9[%c0_34, %c0_35], %48 {strides = array<i32>} : memref<1x1xf32, #tpu.memory_space<vmem>>, vector<1x1xf32>,
    %c2_i32 = arith.constant 2 : i32
    %71 = arith.cmpi eq, %arg1, %c2_i32 : i32
    %72 = arith.extui %71 : i1 to i32
    %c0_i32_36 = arith.constant 0 : i32
    %73 = arith.cmpi ne, %72, %c0_i32_36 : i32
    scf.if %73 {
      %c0_37 = arith.constant 0 : index
      %c0_38 = arith.constant 0 : index
      %74 = vector.load %arg11[%c0_37, %c0_38] : memref<1x128xf32, #tpu.memory_space<vmem>>, vector<1x128xf32>
      %c0_39 = arith.constant 0 : index
      %c0_40 = arith.constant 0 : index
      %75 = vector.load %arg10[%c0_39, %c0_40] : memref<1x1xf32, #tpu.memory_space<vmem>>, vector<1x1xf32>
      %76 = vector.broadcast %75 : vector<1x1xf32> to vector<1x128xf32>
      %77 = arith.divf %74, %76 : vector<1x128xf32>
      %c0_41 = arith.constant 0 : index
      %c0_42 = arith.constant 0 : index
      %c0_43 = arith.constant 0 : index
      %78 = vector.load %arg8[%c0_41, %c0_42, %c0_43] : memref<1x1x128xf32, #tpu.memory_space<vmem>>, vector<1x1x128xf32>
      %79 = vector.shape_cast %78 : vector<1x1x128xf32> to vector<1x128xf32>
      %80 = vector.shape_cast %77 : vector<1x128xf32> to vector<1x1x128xf32>
      tpu.vector_store %arg8[%c0_41, %c0_42, %c0_43], %80 {strides = array<i32>} : memref<1x1x128xf32, #tpu.memory_space<vmem>>, vector<1x1x128xf32>,
    } else {
    }
    return
  }
  func.func @transform_0(%arg0: i32, %arg1: i32) -> (i32, i32, i32) {
    %c0_i32 = arith.constant 0 : i32
    %c0_i32_0 = arith.constant 0 : i32
    return %arg0, %arg1, %c0_i32 : i32, i32, i32
  }
  func.func @transform_1(%arg0: i32, %arg1: i32) -> (i32, i32) {
    %c0_i32 = arith.constant 0 : i32
    %c0_i32_0 = arith.constant 0 : i32
    %c0_i32_1 = arith.constant 0 : i32
    return %c0_i32, %c0_i32_0 : i32, i32
  }
  func.func @transform_2(%arg0: i32, %arg1: i32) -> (i32, i32) {
    %c0_i32 = arith.constant 0 : i32
    %c0_i32_0 = arith.constant 0 : i32
    %c0_i32_1 = arith.constant 0 : i32
    return %c0_i32, %c0_i32_0 : i32, i32
  }
  func.func @transform_3(%arg0: i32, %arg1: i32) -> (i32, i32) {
    %c0_i32 = arith.constant 0 : i32
    %c0_i32_0 = arith.constant 0 : i32
    %c0_i32_1 = arith.constant 0 : i32
    return %c0_i32, %c0_i32_0 : i32, i32
  }
  func.func @transform_4(%arg0: i32, %arg1: i32) -> (i32, i32) {
    %c0_i32 = arith.constant 0 : i32
    %c0_i32_0 = arith.constant 0 : i32
    %c0_i32_1 = arith.constant 0 : i32
    return %c0_i32, %c0_i32_0 : i32, i32
  }
  func.func @transform_5(%arg0: i32, %arg1: i32) -> (i32, i32) {
    %c0_i32 = arith.constant 0 : i32
    %c0_i32_0 = arith.constant 0 : i32
    %c0_i32_1 = arith.constant 0 : i32
    return %c0_i32, %c0_i32_0 : i32, i32
  }
  func.func @transform_6(%arg0: i32, %arg1: i32) -> (i32, i32, i32) {
    %c0_i32 = arith.constant 0 : i32
    %c0_i32_0 = arith.constant 0 : i32
    %c0_i32_1 = arith.constant 0 : i32
    return %arg0, %c0_i32, %c0_i32_0 : i32, i32, i32
  }
}

</mosaic_0001>

<llo_original>
// kernel: tpu_custom_call.1
$region0: #{tpu_custom_call.1}
  #allocation0 [shape = 'u32[]', space=smem, size = 0x4, offset = 0x4, fixed_abs, tag = 'smem constant byte address 0x4 - core index']
  #allocation1 [shape = 'u32[144,128]{1,0:T(1,128)}', space=vmem, size = 0x12000, scoped, tag = 'internal scratch']
  #allocation2 [shape = 'f32[1,1]{1,0:T(1,128)}', space=vmem, size = 0x200, scoped, tag = 'scratch operand']
  #allocation3 [shape = 'f32[1,1]{1,0:T(1,128)}', space=vmem, size = 0x200, scoped, tag = 'scratch operand']
  #allocation4 [shape = 'f32[1,128]{1,0:T(1,128)}', space=vmem, size = 0x200, scoped, tag = 'scratch operand']
  #allocation5 [shape = 'f32[1,1]{1,0:T(1,128)S(6)}', space=smem, size = 0x200, scoped, tag = 'scoped memory for tpu_custom_call.1']
  %s0 = inlined_call_operand.hbm [shape: f32[4,40,256], index: 0, kind: input, shape index: {}]
  %s1 = inlined_call_operand.hbm [shape: bf16[256,128], index: 1, kind: input, shape index: {}]
  %s2 = inlined_call_operand.hbm [shape: bf16[128,256], index: 2, kind: input, shape index: {}]
  %s3 = inlined_call_operand.hbm [shape: f32[1,256], index: 3, kind: input, shape index: {}]
  %s4 = inlined_call_operand.hbm [shape: f32[1,128], index: 4, kind: input, shape index: {}]
  %s5 = inlined_call_operand.<no memory space> [shape: f32[1,1], index: 5, kind: input, shape index: {}]
  %s6 = inlined_call_operand.hbm [shape: f32[4,1,128], index: 6, kind: output, shape index: {}]
  %s7 = sld [smem:[#allocation0]]
  $region85: #{tpu_custom_call.1} parent=0
    _
  %s9 = ssub.s32 1, %s7
  %s10 = scalar_select 0, %s9, %s7
  %11 = sst [smem:[#allocation5]] %s5
  $region1: #{tpu_custom_call.1} parent=0
    #allocation6 [shape = 'u8[32768]{0}', space=vmem, size = 0x8000, scoped, tag = 'input window, operand 0']
    #allocation7 [shape = 's32[2]{0}', space=sflag, size = 0x8, scoped, tag = 'scoped memory for tpu_custom_call.1']
    #allocation8 [shape = 's32[2]{0}', space=sflag, size = 0x8, scoped, tag = 'scoped memory for tpu_custom_call.1']
    #allocation9 [shape = 'u8[65536]{0}', space=vmem, size = 0x10000, scoped, tag = 'input window, operand 1, single buffered']
    #allocation10 [shape = 's32[1]{0}', space=sflag, size = 0x4, scoped, tag = 'scoped memory for tpu_custom_call.1']
    #allocation11 [shape = 'u8[65536]{0}', space=vmem, size = 0x10000, scoped, tag = 'input window, operand 2, single buffered']
    #allocation12 [shape = 'u8[1024]{0}', space=vmem, size = 0x400, scoped, tag = 'input window, operand 3, single buffered']
    #allocation13 [shape = 's32[1]{0}', space=sflag, size = 0x4, scoped, tag = 'scoped memory for tpu_custom_call.1']
    #allocation14 [shape = 'u8[512]{0}', space=vmem, size = 0x400, scoped, tag = 'input window, operand 4, single buffered']
    #allocation15 [shape = 'u8[1024]{0}', space=vmem, size = 0x400, scoped, tag = 'output window, operand 0']
    %12 = vsyncpa [#allocation7], 0
    %s13 = scalar_lea.sflag [#allocation7], 1
    %14 = vsyncpa %s13, 0
    %15 = vsyncpa [#allocation10], 0
    %16 = vsyncpa [#allocation13], 0
    %17 = vsyncpa [#allocation8], 0
    %s18 = scalar_lea.sflag [#allocation8], 1
    %19 = vsyncpa %s18, 0
    loop: start=0, step=1, limit=14
    $region2: #{tpu_custom_call.1} parent=1 // loop_pre_header
      _
    $region3: #{tpu_custom_call.1} parent=1 // loop_header
      %s21 = sphi 0, %s25
      %p22 = scmp.ge.s32.totalorder %s21, 14
      %s28 = sphi 0, %s40
      %s29 = sphi 0, %s36
      %s30 = sphi 0, %s28
      %s31 = sphi 0, %s29
      %s32 = sphi 0, %s30
      %s33 = sphi 0, %s31
      %s45 = sphi 0, %s47
      %s48 = sphi 0, %s45
      %s49 = sphi 0, %s48
      %s65 = sphi 0, %s49
      %s69 = sphi 0, %s69
      %s71 = sphi 0, %s69
      %s72 = sphi 0, %s71
      %s86 = sphi 0, %s72
      %s90 = sphi 0, %s90
      %s92 = sphi 0, %s90
      %s93 = sphi 0, %s92
      %s107 = sphi 0, %s93
      %s111 = sphi 0, %s111
      %s113 = sphi 0, %s111
      %s114 = sphi 0, %s113
      %s128 = sphi 0, %s114
      %s132 = sphi 0, %s132
      %s134 = sphi 0, %s132
      %s135 = sphi 0, %s134
      %s149 = sphi 0, %s135
      %s153 = sphi 0, %s153
      %s155 = sphi 0, %s153
      %s156 = sphi 0, %s155
      %s170 = sphi 0, %s156
      %s176 = sphi 0, %s178
      %s179 = sphi 0, %s176
      %s180 = sphi 0, %s179
      %s196 = sphi 0, %s180
    $region4: #{tpu_custom_call.1} parent=1 // loop_header_branch
      %24 = sbr.rel (%p22) target = $region8
    $region5: #{tpu_custom_call.1} parent=1 // loop_body
      %s26 = ssub.s32 %s21, 1
      %s27 = ssub.s32 %s21, 2
      %s34 = sadd.s32 1, %s29
      %p35 = scmp.ge.s32.totalorder %s34, 3
      %s36 = scalar_select %p35, 0, %s34
      %s37 = sadd.s32 1, %s28
      %s38 = scalar_select %p35, %s37, %s28
      %p39 = scmp.ge.s32.totalorder %s38, 4
      %s40 = scalar_select %p39, 0, %s38
      %s41 = ssub.s32 %s28, %s40
      %s42 = ssub.s32 %s29, %s36
      %s43 = sor.u32 %s41, %s42
      %p44 = scmp.eq.s32.totalorder %s43, 0
      %s46 = sadd.s32 %s45, 1
      %s47 = scalar_select %p44, %s45, %s46
      %p50 = pneg %p44
      %p51 = scmp.eq.s32.totalorder %s21, 11
      %p52 = por %p50, %p51
      %p53 = scmp.ne.s32.totalorder %s45, %s48
      %p54 = scmp.eq.s32.totalorder %s21, 0
      %p55 = por %p53, %p54
      %p56 = scmp.ne.s32.totalorder %s45, %s48
      %p57 = scmp.eq.s32.totalorder %s26, 11
      %p58 = por %p56, %p57
      %p59 = scmp.ne.s32.totalorder %s48, %s49
      %p60 = scmp.eq.s32.totalorder %s26, 0
      %p61 = por %p59, %p60
      %p62 = scmp.ne.s32.totalorder %s48, %s49
      %p63 = scmp.eq.s32.totalorder %s27, 11
      %p64 = por %p62, %p63
      %p66 = scmp.ne.s32.totalorder %s49, %s65
      %p67 = scmp.eq.s32.totalorder %s27, 0
      %p68 = por %p66, %p67
      %s70 = sadd.s32 %s69, 1
      %p73 = scmp.eq.s32.totalorder %s21, 11
      %p74 = scmp.ne.s32.totalorder %s69, %s71
      %p75 = scmp.eq.s32.totalorder %s21, 0
      %p76 = por %p74, %p75
      %p77 = scmp.ne.s32.totalorder %s69, %s71
      %p78 = scmp.eq.s32.totalorder %s26, 11
      %p79 = por %p77, %p78
      %p80 = scmp.ne.s32.totalorder %s71, %s72
      %p81 = scmp.eq.s32.totalorder %s26, 0
      %p82 = por %p80, %p81
      %p83 = scmp.ne.s32.totalorder %s71, %s72
      %p84 = scmp.eq.s32.totalorder %s27, 11
      %p85 = por %p83, %p84
      %p87 = scmp.ne.s32.totalorder %s72, %s86
      %p88 = scmp.eq.s32.totalorder %s27, 0
      %p89 = por %p87, %p88
      %s91 = sadd.s32 %s90, 1
      %p94 = scmp.eq.s32.totalorder %s21, 11
      %p95 = scmp.ne.s32.totalorder %s90, %s92
      %p96 = scmp.eq.s32.totalorder %s21, 0
      %p97 = por %p95, %p96
      %p98 = scmp.ne.s32.totalorder %s90, %s92
      %p99 = scmp.eq.s32.totalorder %s26, 11
      %p100 = por %p98, %p99
      %p101 = scmp.ne.s32.totalorder %s92, %s93
      %p102 = scmp.eq.s32.totalorder %s26, 0
      %p103 = por %p101, %p102
      %p104 = scmp.ne.s32.totalorder %s92, %s93
      %p105 = scmp.eq.s32.totalorder %s27, 11
      %p106 = por %p104, %p105
      %p108 = scmp.ne.s32.totalorder %s93, %s107
      %p109 = scmp.eq.s32.totalorder %s27, 0
      %p110 = por %p108, %p109
      %s112 = sadd.s32 %s111, 1
      %p115 = scmp.eq.s32.totalorder %s21, 11
      %p116 = scmp.ne.s32.totalorder %s111, %s113
      %p117 = scmp.eq.s32.totalorder %s21, 0
      %p118 = por %p116, %p117
      %p119 = scmp.ne.s32.totalorder %s111, %s113
      %p120 = scmp.eq.s32.totalorder %s26, 11
      %p121 = por %p119, %p120
      %p122 = scmp.ne.s32.totalorder %s113, %s114
      %p123 = scmp.eq.s32.totalorder %s26, 0
      %p124 = por %p122, %p123
      %p125 = scmp.ne.s32.totalorder %s113, %s114
      %p126 = scmp.eq.s32.totalorder %s27, 11
      %p127 = por %p125, %p126
      %p129 = scmp.ne.s32.totalorder %s114, %s128
      %p130 = scmp.eq.s32.totalorder %s27, 0
      %p131 = por %p129, %p130
      %s133 = sadd.s32 %s132, 1
      %p136 = scmp.eq.s32.totalorder %s21, 11
      %p137 = scmp.ne.s32.totalorder %s132, %s134
      %p138 = scmp.eq.s32.totalorder %s21, 0
      %p139 = por %p137, %p138
      %p140 = scmp.ne.s32.totalorder %s132, %s134
      %p141 = scmp.eq.s32.totalorder %s26, 11
      %p142 = por %p140, %p141
      %p143 = scmp.ne.s32.totalorder %s134, %s135
      %p144 = scmp.eq.s32.totalorder %s26, 0
      %p145 = por %p143, %p144
      %p146 = scmp.ne.s32.totalorder %s134, %s135
      %p147 = scmp.eq.s32.totalorder %s27, 11
      %p148 = por %p146, %p147
      %p150 = scmp.ne.s32.totalorder %s135, %s149
      %p151 = scmp.eq.s32.totalorder %s27, 0
      %p152 = por %p150, %p151
      %s154 = sadd.s32 %s153, 1
      %p157 = scmp.eq.s32.totalorder %s21, 11
      %p158 = scmp.ne.s32.totalorder %s153, %s155
      %p159 = scmp.eq.s32.totalorder %s21, 0
      %p160 = por %p158, %p159
      %p161 = scmp.ne.s32.totalorder %s153, %s155
      %p162 = scmp.eq.s32.totalorder %s26, 11
      %p163 = por %p161, %p162
      %p164 = scmp.ne.s32.totalorder %s155, %s156
      %p165 = scmp.eq.s32.totalorder %s26, 0
      %p166 = por %p164, %p165
      %p167 = scmp.ne.s32.totalorder %s155, %s156
      %p168 = scmp.eq.s32.totalorder %s27, 11
      %p169 = por %p167, %p168
      %p171 = scmp.ne.s32.totalorder %s156, %s170
      %p172 = scmp.eq.s32.totalorder %s27, 0
      %p173 = por %p171, %p172
      %s174 = ssub.s32 %s28, %s40
      %p175 = scmp.eq.s32.totalorder %s174, 0
      %s177 = sadd.s32 %s176, 1
      %s178 = scalar_select %p175, %s176, %s177
      %p181 = pneg %p175
      %p182 = scmp.eq.s32.totalorder %s21, 11
      %p183 = por %p181, %p182
      %p184 = scmp.ne.s32.totalorder %s176, %s179
      %p185 = scmp.eq.s32.totalorder %s21, 0
      %p186 = por %p184, %p185
      %p187 = scmp.ne.s32.totalorder %s176, %s179
      %p188 = scmp.eq.s32.totalorder %s26, 11
      %p189 = por %p187, %p188
      %p190 = scmp.ne.s32.totalorder %s179, %s180
      %p191 = scmp.eq.s32.totalorder %s26, 0
      %p192 = por %p190, %p191
      %p193 = scmp.ne.s32.totalorder %s179, %s180
      %p194 = scmp.eq.s32.totalorder %s27, 11
      %p195 = por %p193, %p194
      %p197 = scmp.ne.s32.totalorder %s180, %s196
      %p198 = scmp.eq.s32.totalorder %s27, 0
      %p199 = por %p197, %p198
      %p200 = scmp.le.s32.totalorder 1, %s21
      %p201 = scmp.lt.s32.totalorder %s21, 13
      %p202 = pnand %p200, %p201
      %p203 = pneg %p202
      // Predicated region
      $region9: #{tpu_custom_call.1} parent=5 // pred_check
        _
      $region10: #{tpu_custom_call.1} parent=5 // pred_check_branch
        %205 = sbr.rel (%p202) target = $region12
      $region11: #{tpu_custom_call.1} parent=5 // pred_region
        %s206 = ssub.s32 %s21, 1
        // Predicated region
        $region13: #{tpu_custom_call.1} parent=11 // pred_check
          %p207 = pneg %p82
        $region14: #{tpu_custom_call.1} parent=11 // pred_check_branch
          %209 = sbr.rel (%p207) target = $region16
        $region15: #{tpu_custom_call.1} parent=11 // pred_region
          %s211 = ssub.s32 2048, 2048
          %212 = vsyncadd [#allocation10], %s211
          %s213 = sshll.u32 [#allocation9], 4
          %s214 = int_to_ptr.vmem [resolvable:$true] %s213
          %219 = dma.hbm_to_vmem [thread:$0]  %s1, 2048, %s214, [#allocation10], 64, 64, 4
        $region16: #{tpu_custom_call.1} parent=11 // pred_fallthru
          _
        // Predicated region
        $region17: #{tpu_custom_call.1} parent=11 // pred_check
          %p220 = pneg %p103
        $region18: #{tpu_custom_call.1} parent=11 // pred_check_branch
          %222 = sbr.rel (%p220) target = $region20
        $region19: #{tpu_custom_call.1} parent=11 // pred_region
          %s224 = ssub.s32 2048, 2048
          %225 = vsyncadd [#allocation10], %s224
          %s226 = sshll.u32 [#allocation11], 4
          %s227 = int_to_ptr.vmem [resolvable:$true] %s226
          %232 = dma.hbm_to_vmem [thread:$0]  %s2, 2048, %s227, [#allocation10], 128, 128, 8
        $region20: #{tpu_custom_call.1} parent=11 // pred_fallthru
          _
        // Predicated region
        $region21: #{tpu_custom_call.1} parent=11 // pred_check
          %p233 = pneg %p124
        $region22: #{tpu_custom_call.1} parent=11 // pred_check_branch
          %235 = sbr.rel (%p233) target = $region24
        $region23: #{tpu_custom_call.1} parent=11 // pred_region
          %s237 = ssub.s32 32, 32
          %238 = vsyncadd [#allocation13], %s237
          %s240 = sshll.u32 [#allocation12], 4
          %s241 = int_to_ptr.vmem [resolvable:$true] %s240
          %243 = dma.hbm_to_vmem [thread:$0]  %s3, 32, %s241, [#allocation13]
        $region24: #{tpu_custom_call.1} parent=11 // pred_fallthru
          _
        // Predicated region
        $region25: #{tpu_custom_call.1} parent=11 // pred_check
          %p244 = pneg %p145
        $region26: #{tpu_custom_call.1} parent=11 // pred_check_branch
          %246 = sbr.rel (%p244) target = $region28
        $region27: #{tpu_custom_call.1} parent=11 // pred_region
          %s248 = ssub.s32 16, 16
          %249 = vsyncadd [#allocation13], %s248
          %s251 = sshll.u32 [#allocation14], 4
          %s252 = int_to_ptr.vmem [resolvable:$true] %s251
          %254 = dma.hbm_to_vmem [thread:$0]  %s4, 16, %s252, [#allocation13]
        $region28: #{tpu_custom_call.1} parent=11 // pred_fallthru
          _
        // Predicated region
        $region29: #{tpu_custom_call.1} parent=11 // pred_check
          %p255 = pneg %p166
        $region30: #{tpu_custom_call.1} parent=11 // pred_check_branch
          %257 = sbr.rel (%p255) target = $region32
        $region31: #{tpu_custom_call.1} parent=11 // pred_region
          _
        $region32: #{tpu_custom_call.1} parent=11 // pred_fallthru
          _
      $region12: #{tpu_custom_call.1} parent=5 // pred_fallthru
        _
      %p258 = scmp.lt.s32.totalorder %s21, 12
      // Predicated region
      $region33: #{tpu_custom_call.1} parent=5 // pred_check
        %p259 = pneg %p258
      $region34: #{tpu_custom_call.1} parent=5 // pred_check_branch
        %261 = sbr.rel (%p259) target = $region36
      $region35: #{tpu_custom_call.1} parent=5 // pred_region
        // Predicated region
        $region37: #{tpu_custom_call.1} parent=35 // pred_check
          %p262 = pneg %p55
        $region38: #{tpu_custom_call.1} parent=35 // pred_check_branch
          %264 = sbr.rel (%p262) target = $region40
        $region39: #{tpu_custom_call.1} parent=35 // pred_region
          %s265 = sand.u32 %s45, 1
          %s266 = scalar_lea.sflag [#allocation7], %s265
          %s267 = sand.u32 %s45, 1
          %s268 = smul.addr %s267, 32
          %s269 = scalar_lea.vmem [#allocation6], %s268
          %s270 = smul.u32 2, %s29
          %s271 = ssub.s32 5, %s270
          %p272 = scmp.lt.s32.totalorder %s271, 2
          %s273 = scalar_select %p272, %s271, 2
          %s274 = smul.u32 128, %s273
          %s275 = smul.u32 %s274, 2
          %s277 = ssub.s32 512, %s275
          %278 = vsyncadd %s266, %s277
          %p279 = scmp.ne.s32.totalorder 0, %s275
          %s280 = smul.addr %s270, 2
          %s281 = smul.addr %s28, 10
          %s282 = sadd.s32 %s280, %s281
          %s283 = smul.addr %s282, 128
          %s284 = scalar_lea.hbm %s0, %s283
          %s285 = smul.u32 16, %s273
          %s286 = sshll.u32 %s269, 4
          %s287 = int_to_ptr.vmem [resolvable:$true] %s286
          %s288 = sshll.u32 %s285, 4
          %292 = dma.hbm_to_vmem [thread:$0]  (%p279), %s284, %s288, %s287, %s266, 256, 256, 16
        $region40: #{tpu_custom_call.1} parent=35 // pred_fallthru
          _
      $region36: #{tpu_custom_call.1} parent=5 // pred_fallthru
        _
      %p293 = scmp.le.s32.totalorder 1, %s21
      %p294 = scmp.lt.s32.totalorder %s21, 13
      %p295 = pnand %p293, %p294
      %p296 = pneg %p295
      // Predicated region
      $region41: #{tpu_custom_call.1} parent=5 // pred_check
        _
      $region42: #{tpu_custom_call.1} parent=5 // pred_check_branch
        %298 = sbr.rel (%p295) target = $region44
      $region43: #{tpu_custom_call.1} parent=5 // pred_region
        %s299 = ssub.s32 %s21, 1
        %s300 = sand.u32 %s48, 1
        %s301 = scalar_lea.sflag [#allocation7], %s300
        %s302 = sand.u32 %s48, 1
        %s303 = smul.addr %s302, 32
        %s304 = scalar_lea.vmem [#allocation6], %s303
        // Predicated region
        $region45: #{tpu_custom_call.1} parent=43 // pred_check
          %p305 = pneg %p61
        $region46: #{tpu_custom_call.1} parent=43 // pred_check_branch
          %307 = sbr.rel (%p305) target = $region48
        $region47: #{tpu_custom_call.1} parent=43 // pred_region
          %308 = dma.done %s301, 512
        $region48: #{tpu_custom_call.1} parent=43 // pred_fallthru
          _
        // Predicated region
        $region49: #{tpu_custom_call.1} parent=43 // pred_check
          %p309 = pneg %p82
        $region50: #{tpu_custom_call.1} parent=43 // pred_check_branch
          %311 = sbr.rel (%p309) target = $region52
        $region51: #{tpu_custom_call.1} parent=43 // pred_region
          %312 = dma.done [#allocation10], 2048
        $region52: #{tpu_custom_call.1} parent=43 // pred_fallthru
          _
        // Predicated region
        $region53: #{tpu_custom_call.1} parent=43 // pred_check
          %p313 = pneg %p103
        $region54: #{tpu_custom_call.1} parent=43 // pred_check_branch
          %315 = sbr.rel (%p313) target = $region56
        $region55: #{tpu_custom_call.1} parent=43 // pred_region
          %316 = dma.done [#allocation10], 2048
        $region56: #{tpu_custom_call.1} parent=43 // pred_fallthru
          _
        // Predicated region
        $region57: #{tpu_custom_call.1} parent=43 // pred_check
          %p317 = pneg %p124
        $region58: #{tpu_custom_call.1} parent=43 // pred_check_branch
          %319 = sbr.rel (%p317) target = $region60
        $region59: #{tpu_custom_call.1} parent=43 // pred_region
          %320 = dma.done [#allocation13], 32
        $region60: #{tpu_custom_call.1} parent=43 // pred_fallthru
          _
        // Predicated region
        $region61: #{tpu_custom_call.1} parent=43 // pred_check
          %p321 = pneg %p145
        $region62: #{tpu_custom_call.1} parent=43 // pred_check_branch
          %323 = sbr.rel (%p321) target = $region64
        $region63: #{tpu_custom_call.1} parent=43 // pred_region
          %324 = dma.done [#allocation13], 16
        $region64: #{tpu_custom_call.1} parent=43 // pred_fallthru
          _
        %s325 = sand.u32 %s48, 1
        %s326 = scalar_lea.sflag [#allocation7], %s325
        %s327 = sand.u32 %s48, 1
        %s328 = smul.addr %s327, 32
        %s329 = scalar_lea.vmem [#allocation6], %s328
        %p330 = pneg %p61
        %p331 = pneg %p58
        %p332 = pneg %p82
        %p333 = pneg %p79
        %p334 = pneg %p103
        %p335 = pneg %p100
        %p336 = pneg %p124
        %p337 = pneg %p121
        %p338 = pneg %p145
        %p339 = pneg %p142
        %p340 = pneg %p166
        %p341 = pneg %p163
        %p342 = pneg %p192
        %p343 = pneg %p189
        %s344 = sand.u32 %s179, 1
        %s345 = scalar_lea.sflag [#allocation8], %s344
        %s346 = sand.u32 %s179, 1
        %s347 = scalar_lea.vmem [#allocation15], %s346
        %s348 = smul.u32 2, %s31
        %s349 = ssub.s32 5, %s348
        %p350 = scmp.lt.s32.totalorder %s349, 2
        %s351 = scalar_select %p350, %s349, 2
        %s352 = smul.u32 128, %s351
        %s353 = smul.u32 %s352, 2
        %p355 = scmp.eq.s32.totalorder %s31, 0
        // Predicated region
        $region65: #{tpu_custom_call.1} parent=43 // pred_check
          %p356 = pneg %p355
        $region66: #{tpu_custom_call.1} parent=43 // pred_check_branch
          %358 = sbr.rel (%p356) target = $region68
        $region67: #{tpu_custom_call.1} parent=43 // pred_region
          %vm359 = vcmask 0
          %360 = vst.msk [vmem:[#allocation2] sm:$0x1] %vm359, -1e+30
          %361 = vst.msk [vmem:[#allocation3] sm:$0x1] %vm359, 0.0
          %362 = vst [vmem:[#allocation4] sm:$0x1] 0.0
        $region68: #{tpu_custom_call.1} parent=43 // pred_fallthru
          _
        %s363 = smul.u32 %s31, 16
        %v364 = vlaneseq
        %v365 = vshrl.u32 %v364, 7
        %v366 = vadd.s32 %v365, 8
        %v367 = vstv %s363
        %v368 = vadd.s32 %v367, %v365
        %v369 = vadd.s32 %v367, %v366
        %vm370 = vcmp.lt.s32.totalorder %v368, 40
        %vm371 = vcmp.lt.s32.totalorder %v369, 40
        %v372 = vld [vmem:[%s304] sm:$0xff]
        %v373 = vld [vmem:[%s304 + $0x8] sm:$0xff]
        %v374 = vld [vmem:[%s304 + $0x10] sm:$0xff]
        %v375 = vld [vmem:[%s304 + $0x18] sm:$0xff]
        %v376 = vpack.c.bf16 %v374, %v372
        %v377 = vpack.c.bf16 %v375, %v373
        %v378 = vld [vmem:[#allocation9] sm:$0xf]
        %v379 = vld [vmem:[#allocation9 + $0x4] sm:$0xf]
        %v380 = vld [vmem:[#allocation9 + $0x8] sm:$0xf]
        %v381 = vld [vmem:[#allocation9 + $0xc] sm:$0xf]
        %v382 = vld [vmem:[#allocation9 + $0x10] sm:$0xf]
        %v383 = vld [vmem:[#allocation9 + $0x14] sm:$0xf]
        %v384 = vld [vmem:[#allocation9 + $0x18] sm:$0xf]
        %v385 = vld [vmem:[#allocation9 + $0x1c] sm:$0xf]
        %v386 = vld [vmem:[#allocation9 + $0x20] sm:$0xf]
        %v387 = vld [vmem:[#allocation9 + $0x24] sm:$0xf]
        %v388 = vld [vmem:[#allocation9 + $0x28] sm:$0xf]
        %v389 = vld [vmem:[#allocation9 + $0x2c] sm:$0xf]
        %v390 = vld [vmem:[#allocation9 + $0x30] sm:$0xf]
        %v391 = vld [vmem:[#allocation9 + $0x34] sm:$0xf]
        %v392 = vld [vmem:[#allocation9 + $0x38] sm:$0xf]
        %v393 = vld [vmem:[#allocation9 + $0x3c] sm:$0xf]
        %v394 = vld [vmem:[#allocation9 + $0x40] sm:$0xf]
        %v395 = vld [vmem:[#allocation9 + $0x44] sm:$0xf]
        %v396 = vld [vmem:[#allocation9 + $0x48] sm:$0xf]
        %v397 = vld [vmem:[#allocation9 + $0x4c] sm:$0xf]
        %v398 = vld [vmem:[#allocation9 + $0x50] sm:$0xf]
        %v399 = vld [vmem:[#allocation9 + $0x54] sm:$0xf]
        %v400 = vld [vmem:[#allocation9 + $0x58] sm:$0xf]
        %v401 = vld [vmem:[#allocation9 + $0x5c] sm:$0xf]
        %v402 = vld [vmem:[#allocation9 + $0x60] sm:$0xf]
        %v403 = vld [vmem:[#allocation9 + $0x64] sm:$0xf]
        %v404 = vld [vmem:[#allocation9 + $0x68] sm:$0xf]
        %v405 = vld [vmem:[#allocation9 + $0x6c] sm:$0xf]
        %v406 = vld [vmem:[#allocation9 + $0x70] sm:$0xf]
        %v407 = vld [vmem:[#allocation9 + $0x74] sm:$0xf]
        %v408 = vld [vmem:[#allocation9 + $0x78] sm:$0xf]
        %v409 = vld [vmem:[#allocation9 + $0x7c] sm:$0xf]
        %v442 = vunpack.c.l.b16 %v378
        %v443 = vunpack.c.l.b16 %v379
        %v444 = vunpack.c.l.b16 %v380
        %v445 = vunpack.c.l.b16 %v381
        %v446 = vunpack.c.l.b16 %v382
        %v447 = vunpack.c.l.b16 %v383
        %v448 = vunpack.c.l.b16 %v384
        %v449 = vunpack.c.l.b16 %v385
        %v450 = vunpack.c.l.b16 %v386
        %v451 = vunpack.c.l.b16 %v387
        %v452 = vunpack.c.l.b16 %v388
        %v453 = vunpack.c.l.b16 %v389
        %v454 = vunpack.c.l.b16 %v390
        %v455 = vunpack.c.l.b16 %v391
        %v456 = vunpack.c.l.b16 %v392
        %v457 = vunpack.c.l.b16 %v393
        %v458 = vunpack.c.l.b16 %v394
        %v459 = vunpack.c.l.b16 %v395
        %v460 = vunpack.c.l.b16 %v396
        %v461 = vunpack.c.l.b16 %v397
        %v462 = vunpack.c.l.b16 %v398
        %v463 = vunpack.c.l.b16 %v399
        %v464 = vunpack.c.l.b16 %v400
        %v465 = vunpack.c.l.b16 %v401
        %v466 = vunpack.c.l.b16 %v402
        %v467 = vunpack.c.l.b16 %v403
        %v468 = vunpack.c.l.b16 %v404
        %v469 = vunpack.c.l.b16 %v405
        %v470 = vunpack.c.l.b16 %v406
        %v471 = vunpack.c.l.b16 %v407
        %v472 = vunpack.c.l.b16 %v408
        %v473 = vunpack.c.l.b16 %v409
        %v474 = vpack.c.b16 %v443, %v442
        %v475 = vpack.c.b16 %v445, %v444
        %v476 = vpack.c.b16 %v447, %v446
        %v477 = vpack.c.b16 %v449, %v448
        %v478 = vpack.c.b16 %v451, %v450
        %v479 = vpack.c.b16 %v453, %v452
        %v480 = vpack.c.b16 %v455, %v454
        %v481 = vpack.c.b16 %v457, %v456
        %v482 = vpack.c.b16 %v459, %v458
        %v483 = vpack.c.b16 %v461, %v460
        %v484 = vpack.c.b16 %v463, %v462
        %v485 = vpack.c.b16 %v465, %v464
        %v486 = vpack.c.b16 %v467, %v466
        %v487 = vpack.c.b16 %v469, %v468
        %v488 = vpack.c.b16 %v471, %v470
        %v489 = vpack.c.b16 %v473, %v472
        %506 = vmatprep.subr.bf16.mxu0 0
        %507 = vmatpush1.bf16.msra.mxu0 %v474
        %508 = vmatprep.subr.bf16.mxu0 0
        %509 = vmatpush1.bf16.msra.mxu0 %v475
        %510 = vmatprep.subr.bf16.mxu0 0
        %511 = vmatpush1.bf16.msra.mxu0 %v476
        %512 = vmatprep.subr.bf16.mxu0 0
        %513 = vmatpush1.bf16.msra.mxu0 %v477
        %514 = vmatprep.subr.bf16.mxu0 0
        %515 = vmatpush1.bf16.msra.mxu0 %v478
        %516 = vmatprep.subr.bf16.mxu0 0
        %517 = vmatpush1.bf16.msra.mxu0 %v479
        %518 = vmatprep.subr.bf16.mxu0 0
        %519 = vmatpush1.bf16.msra.mxu0 %v480
        %520 = vmatprep.subr.bf16.mxu0 0
        %521 = vmatpush1.bf16.msra.mxu0 %v481
        %522 = vmatprep.subr.bf16.mxu0 0
        %523 = vmatpush1.bf16.msra.mxu0 %v482
        %524 = vmatprep.subr.bf16.mxu0 0
        %525 = vmatpush1.bf16.msra.mxu0 %v483
        %526 = vmatprep.subr.bf16.mxu0 0
        %527 = vmatpush1.bf16.msra.mxu0 %v484
        %528 = vmatprep.subr.bf16.mxu0 0
        %529 = vmatpush1.bf16.msra.mxu0 %v485
        %530 = vmatprep.subr.bf16.mxu0 0
        %531 = vmatpush1.bf16.msra.mxu0 %v486
        %532 = vmatprep.subr.bf16.mxu0 0
        %533 = vmatpush1.bf16.msra.mxu0 %v487
        %534 = vmatprep.subr.bf16.mxu0 0
        %535 = vmatpush1.bf16.msra.mxu0 %v488
        %536 = vmatprep.subr.bf16.mxu0 0
        %537 = vmatpush1.bf16.msra.mxu0 %v489
        %538 = vmatprep.mubr.bf16.mxu0 %v377
        %539 = vmatmul.mubr.bf16.gmra.mrb[0].mxu0 %v376
        %v540 = vpop.f32.mrb[0].mxu0
        %v541 = vadd.f32 0.0, %v540
        %v542 = vpop.f32.mrb[0].mxu0
        %v543 = vpop.f32.mrb[0].mxu0
        %v544 = vadd.f32 0.0, %v543
        %v545 = vpop.f32.mrb[0].mxu0
        %546 = vdwg.mxu0
        %v547 = vmax.f32 %v541, 0.0
        %v548 = vmax.f32 %v544, 0.0
        %v549 = vsel %vm370, 1, 0
        %v550 = vsel %vm371, 1, 0
        %vm551 = vcmp.eq.s32.totalorder %v549, 1
        %vm552 = vcmp.eq.s32.totalorder %v550, 1
        %v553 = vsel %vm551, %v547, 0.0
        %v554 = vsel %vm552, %v548, 0.0
        %v555 = vpack.c.bf16 %v554, %v553
        %v556 = vld [vmem:[#allocation11] sm:$0xff]
        %v557 = vld [vmem:[#allocation11 + $0x8] sm:$0xff]
        %v558 = vld [vmem:[#allocation11 + $0x10] sm:$0xff]
        %v559 = vld [vmem:[#allocation11 + $0x18] sm:$0xff]
        %v560 = vld [vmem:[#allocation11 + $0x20] sm:$0xff]
        %v561 = vld [vmem:[#allocation11 + $0x28] sm:$0xff]
        %v562 = vld [vmem:[#allocation11 + $0x30] sm:$0xff]
        %v563 = vld [vmem:[#allocation11 + $0x38] sm:$0xff]
        %v564 = vld [vmem:[#allocation11 + $0x40] sm:$0xff]
        %v565 = vld [vmem:[#allocation11 + $0x48] sm:$0xff]
        %v566 = vld [vmem:[#allocation11 + $0x50] sm:$0xff]
        %v567 = vld [vmem:[#allocation11 + $0x58] sm:$0xff]
        %v568 = vld [vmem:[#allocation11 + $0x60] sm:$0xff]
        %v569 = vld [vmem:[#allocation11 + $0x68] sm:$0xff]
        %v570 = vld [vmem:[#allocation11 + $0x70] sm:$0xff]
        %v571 = vld [vmem:[#allocation11 + $0x78] sm:$0xff]
        %v572 = vld [vmem:[#allocation12] sm:$0x3]
        %v574 = vlaneseq
        %v575 = vshrl.u32 %v574, 7
        %v576 = vsub.s32 0, %v575
        %v577 = vrot.slane %v572, %v576
        %v578 = vlaneseq
        %v579 = vshrl.u32 %v578, 7
        %v580 = vsub.s32 1, %v579
        %v581 = vrot.slane %v572, %v580
        %v600 = vunpack.c.l.b16 %v556
        %v601 = vunpack.c.h.b16 %v556
        %v602 = vunpack.c.l.b16 %v557
        %v603 = vunpack.c.h.b16 %v557
        %v604 = vunpack.c.l.b16 %v558
        %v605 = vunpack.c.h.b16 %v558
        %v606 = vunpack.c.l.b16 %v559
        %v607 = vunpack.c.h.b16 %v559
        %v608 = vunpack.c.l.b16 %v560
        %v609 = vunpack.c.h.b16 %v560
        %v610 = vunpack.c.l.b16 %v561
        %v611 = vunpack.c.h.b16 %v561
        %v612 = vunpack.c.l.b16 %v562
        %v613 = vunpack.c.h.b16 %v562
        %v614 = vunpack.c.l.b16 %v563
        %v615 = vunpack.c.h.b16 %v563
        %v616 = vunpack.c.l.b16 %v564
        %v617 = vunpack.c.h.b16 %v564
        %v618 = vunpack.c.l.b16 %v565
        %v619 = vunpack.c.h.b16 %v565
        %v620 = vunpack.c.l.b16 %v566
        %v621 = vunpack.c.h.b16 %v566
        %v622 = vunpack.c.l.b16 %v567
        %v623 = vunpack.c.h.b16 %v567
        %v624 = vunpack.c.l.b16 %v568
        %v625 = vunpack.c.h.b16 %v568
        %v626 = vunpack.c.l.b16 %v569
        %v627 = vunpack.c.h.b16 %v569
        %v628 = vunpack.c.l.b16 %v570
        %v629 = vunpack.c.h.b16 %v570
        %v630 = vunpack.c.l.b16 %v571
        %v631 = vunpack.c.h.b16 %v571
        %v632 = vpack.c.b16 %v602, %v600
        %v633 = vpack.c.b16 %v603, %v601
        %v634 = vpack.c.b16 %v606, %v604
        %v635 = vpack.c.b16 %v607, %v605
        %v636 = vpack.c.b16 %v610, %v608
        %v637 = vpack.c.b16 %v611, %v609
        %v638 = vpack.c.b16 %v614, %v612
        %v639 = vpack.c.b16 %v615, %v613
        %v640 = vpack.c.b16 %v618, %v616
        %v641 = vpack.c.b16 %v619, %v617
        %v642 = vpack.c.b16 %v622, %v620
        %v643 = vpack.c.b16 %v623, %v621
        %v644 = vpack.c.b16 %v626, %v624
        %v645 = vpack.c.b16 %v627, %v625
        %v646 = vpack.c.b16 %v630, %v628
        %v647 = vpack.c.b16 %v631, %v629
        %664 = vmatprep.subr.bf16.mxu0 %v633
        %665 = vmatpush1.bf16.msra.mxu0 %v632
        %666 = vmatprep.subr.bf16.mxu0 %v635
        %667 = vmatpush1.bf16.msra.mxu0 %v634
        %668 = vmatprep.subr.bf16.mxu0 %v637
        %669 = vmatpush1.bf16.msra.mxu0 %v636
        %670 = vmatprep.subr.bf16.mxu0 %v639
        %671 = vmatpush1.bf16.msra.mxu0 %v638
        %672 = vmatprep.subr.bf16.mxu0 %v641
        %673 = vmatpush1.bf16.msra.mxu0 %v640
        %674 = vmatprep.subr.bf16.mxu0 %v643
        %675 = vmatpush1.bf16.msra.mxu0 %v642
        %676 = vmatprep.subr.bf16.mxu0 %v645
        %677 = vmatpush1.bf16.msra.mxu0 %v644
        %678 = vmatprep.subr.bf16.mxu0 %v647
        %679 = vmatpush1.bf16.msra.mxu0 %v646
        %680 = vmatprep.subr.bf16.mxu0 0
        %681 = vmatpush1.bf16.msra.mxu0 0
        %682 = vmatprep.subr.bf16.mxu0 0
        %683 = vmatpush1.bf16.msra.mxu0 0
        %684 = vmatprep.subr.bf16.mxu0 0
        %685 = vmatpush1.bf16.msra.mxu0 0
        %686 = vmatprep.subr.bf16.mxu0 0
        %687 = vmatpush1.bf16.msra.mxu0 0
        %688 = vmatprep.subr.bf16.mxu0 0
        %689 = vmatpush1.bf16.msra.mxu0 0
        %690 = vmatprep.subr.bf16.mxu0 0
        %691 = vmatpush1.bf16.msra.mxu0 0
        %692 = vmatprep.subr.bf16.mxu0 0
        %693 = vmatpush1.bf16.msra.mxu0 0
        %694 = vmatprep.subr.bf16.mxu0 0
        %695 = vmatpush1.bf16.msra.mxu0 0
        %696 = vmatprep.mubr.bf16.mxu0 0
        %697 = vmatmul.mubr.bf16.gmra.mrb[0].mxu0 %v555
        %v698 = vpop.f32.mrb[0].mxu0
        %v699 = vadd.f32 %v577, %v698
        %v700 = vpop.f32.mrb[0].mxu0
        %v701 = vadd.f32 %v581, %v700
        %v702 = vpop.f32.mrb[0].mxu0
        %v703 = vadd.f32 %v577, %v702
        %v704 = vpop.f32.mrb[0].mxu0
        %v705 = vadd.f32 %v581, %v704
        %706 = vdwg.mxu0
        %v707 = vtanh.pop %v699
        %v708 = vtanh.pop %v703
        %v709 = vxor.u32 %v701, 2147483648
        %v710 = vxor.u32 %v705, 2147483648
        %v711 = vmul.f32 %v709, 1.442695
        %v712 = vpow.pop %v711
        %v713 = vmul.f32 %v710, 1.442695
        %v714 = vpow.pop %v713
        %v715 = vadd.f32 %v712, 1.0
        %v716 = vadd.f32 %v714, 1.0
        %v717 = vrcp.pop %v715
        %v718 = vmul.f32 1.0, %v717
        %v719 = vrcp.pop %v716
        %v720 = vmul.f32 1.0, %v719
        %v721 = vmul.f32 %v707, %v718
        %v722 = vmul.f32 %v708, %v720
        %v723 = vld [vmem:[#allocation14] sm:$0x1]
        %v725 = vlaneseq
        %v726 = vshrl.u32 %v725, 7
        %v727 = vsub.s32 0, %v726
        %v728 = vrot.slane %v723, %v727
        %v730 = vmul.f32 %v721, %v728
        %v731 = vmul.f32 %v722, %v728
        %732 = vadd.xlane.f32.xlu0 %v730
        %v733 = vpop.xlane.xlu0 %732
        %734 = vadd.xlane.f32.xlu0 %v731
        %v735 = vpop.xlane.xlu0 %734
        %s736 = sld [smem:[#allocation5]]
        %v737 = vstv %s736
        %v738 = vadd.f32 %v733, %v737
        %v739 = vadd.f32 %v735, %v737
        %v740 = vsel %vm370, %v738, -1e+30
        %v741 = vsel %vm371, %v739, -1e+30
        %v742 = vld [vmem:[#allocation2] sm:$0x1]
        %v743 = vmax.f32 %v740, %v741
        %v744 = vrot.slane %v743, 4
        %v745 = vmax.f32 %v743, %v744
        %v746 = vrot.slane %v745, 2
        %v747 = vmax.f32 %v745, %v746
        %v748 = vrot.slane %v747, 1
        %v749 = vmax.f32 %v747, %v748
        %v750 = vmax.f32 %v742, %v749
        %v751 = vsub.f32 %v742, %v750
        %v752 = vmul.f32 %v751, 1.442695
        %v753 = vpow.pop %v752
        %v755 = vlaneseq
        %v756 = vshrl.u32 %v755, 7
        %v757 = vsub.s32 0, %v756
        %v758 = vrot.slane %v750, %v757
        %v760 = vsub.f32 %v740, %v758
        %v761 = vsub.f32 %v741, %v758
        %v762 = vmul.f32 %v760, 1.442695
        %v763 = vpow.pop %v762
        %v764 = vmul.f32 %v761, 1.442695
        %v765 = vpow.pop %v764
        %v766 = vld [vmem:[#allocation3] sm:$0x1]
        %v767 = vmul.f32 %v753, %v766
        %vm768 = vcmask 7168
        %v769 = vsel %vm768, %v763, 0.0
        %v770 = vsel %vm768, %v765, 0.0
        %v771 = vadd.f32 %v769, %v770
        %v772 = vrot.slane %v771, 4
        %v773 = vadd.f32 %v771, %v772
        %v774 = vrot.slane %v773, 2
        %v775 = vadd.f32 %v773, %v774
        %v776 = vrot.slane %v775, 1
        %v777 = vadd.f32 %v775, %v776
        %v778 = vadd.f32 %v767, %v777
        %vm779 = vcmask 0
        %780 = vst.msk [vmem:[#allocation3] sm:$0x1] %vm779, %v778
        %v781 = vld [vmem:[#allocation4] sm:$0x1]
        %783 = vset.pattern.permute.xlu0 0
        %784 = vperm.xlu0 %783, %v753
        %v785 = vpop.permute.xlu0 %784
        %v787 = vlaneseq
        %v788 = vshrl.u32 %v787, 7
        %v789 = vsub.s32 0, %v788
        %v790 = vrot.slane %v785, %v789
        %v791 = vmul.f32 %v790, %v781
        %793 = vset.pattern.permute.xlu0 0
        %794 = vperm.xlu0 %793, %v763
        %v795 = vpop.permute.xlu0 %794
        %798 = vset.pattern.permute.xlu0 0
        %799 = vperm.xlu0 %798, %v765
        %v800 = vpop.permute.xlu0 %799
        %v802 = vmul.f32 %v795, %v553
        %v803 = vmul.f32 %v800, %v554
        %v804 = vadd.f32 %v802, %v803
        %v805 = vrot.slane %v804, 4
        %v806 = vadd.f32 %v804, %v805
        %v807 = vrot.slane %v806, 2
        %v808 = vadd.f32 %v806, %v807
        %v809 = vrot.slane %v808, 1
        %v810 = vadd.f32 %v808, %v809
        %v811 = vadd.f32 %v791, %v810
        %812 = vst [vmem:[#allocation4] sm:$0x1] %v811
        %813 = vst.msk [vmem:[#allocation2] sm:$0x1] %vm779, %v750
        %p814 = scmp.eq.s32.totalorder %s31, 2
        // Predicated region
        $region69: #{tpu_custom_call.1} parent=43 // pred_check
          %p815 = pneg %p814
        $region70: #{tpu_custom_call.1} parent=43 // pred_check_branch
          %817 = sbr.rel (%p815) target = $region72
        $region71: #{tpu_custom_call.1} parent=43 // pred_region
          %v818 = vld [vmem:[#allocation4] sm:$0x1]
          %v819 = vld [vmem:[#allocation3] sm:$0x1]
          %821 = vset.pattern.permute.xlu0 0
          %822 = vperm.xlu0 %821, %v819
          %v823 = vpop.permute.xlu0 %822
          %v825 = vlaneseq
          %v826 = vshrl.u32 %v825, 7
          %v827 = vsub.s32 0, %v826
          %v828 = vrot.slane %v823, %v827
          %v829 = vrcp.pop %v828
          %v830 = vmul.f32 %v818, %v829
          %831 = vst [vmem:[%s347] sm:$0x1] %v830
        $region72: #{tpu_custom_call.1} parent=43 // pred_fallthru
          _
        %s832 = sand.u32 %s179, 1
        %s833 = scalar_lea.sflag [#allocation8], %s832
        %s834 = sand.u32 %s179, 1
        %s835 = scalar_lea.vmem [#allocation15], %s834
        // Predicated region
        $region73: #{tpu_custom_call.1} parent=43 // pred_check
          %p836 = pneg %p189
        $region74: #{tpu_custom_call.1} parent=43 // pred_check_branch
          %838 = sbr.rel (%p836) target = $region76
        $region75: #{tpu_custom_call.1} parent=43 // pred_region
          %s840 = ssub.s32 16, 16
          %841 = vsyncadd %s833, %s840
          %s842 = smul.addr %s30, 16
          %s843 = scalar_lea.hbm %s6, %s842
          %s845 = sshll.u32 %s835, 4
          %s846 = int_to_ptr.vmem [resolvable:$true] %s845
          %848 = dma.vmem_to_hbm [thread:$0]  %s846, 16, %s843, %s833
        $region76: #{tpu_custom_call.1} parent=43 // pred_fallthru
          _
      $region44: #{tpu_custom_call.1} parent=5 // pred_fallthru
        _
      %p849 = scmp.le.s32.totalorder 2, %s21
      // Predicated region
      $region77: #{tpu_custom_call.1} parent=5 // pred_check
        %p850 = pneg %p849
      $region78: #{tpu_custom_call.1} parent=5 // pred_check_branch
        %852 = sbr.rel (%p850) target = $region80
      $region79: #{tpu_custom_call.1} parent=5 // pred_region
        %s853 = ssub.s32 %s21, 2
        // Predicated region
        $region81: #{tpu_custom_call.1} parent=79 // pred_check
          %p854 = pneg %p195
        $region82: #{tpu_custom_call.1} parent=79 // pred_check_branch
          %856 = sbr.rel (%p854) target = $region84
        $region83: #{tpu_custom_call.1} parent=79 // pred_region
          %s857 = sand.u32 %s180, 1
          %s858 = scalar_lea.sflag [#allocation8], %s857
          %s859 = sand.u32 %s180, 1
          %s860 = scalar_lea.vmem [#allocation15], %s859
          %861 = dma.done %s858, 16
        $region84: #{tpu_custom_call.1} parent=79 // pred_fallthru
          _
      $region80: #{tpu_custom_call.1} parent=5 // pred_fallthru
        _
    $region6: #{tpu_custom_call.1} parent=1 // loop_footer
      %s25 = sadd.s32 1, %s21
    $region7: #{tpu_custom_call.1} parent=1 // loop_footer_branch
      %20 = sbr.rel target = $region3
    $region8: #{tpu_custom_call.1} parent=1 // loop_exit
      _
    %862 = vsyncpa [#allocation7], 1
    %s863 = scalar_lea.sflag [#allocation7], 1
    %864 = vsyncpa %s863, 1
    %865 = vsyncpa [#allocation10], 1
    %866 = vsyncpa [#allocation13], 1
    %867 = vsyncpa [#allocation8], 1
    %s868 = scalar_lea.sflag [#allocation8], 1
    %869 = vsyncpa %s868, 1

</llo_original>
